<compile_context>
chip_gen: v7x
topology: tpu7x:2x2x1
jax: 0.10.0
libtpu: 0.0.40
codegen_flags: <defaults>
</compile_context>

<pallas_src>
import jax
import jax.numpy as jnp
from jax.experimental import pallas as pl
from jax.experimental.pallas import tpu as pltpu

MARGIN = 1.2


# ----------------------------- fused Pallas kernel -----------------------------

def _fused_mgn_loss(feat_list, logit_list, labels):
    """Returns (loss_sum, triplet_mean, ce_mean), each as a (1,1) f32 array."""
    n_tri = len(feat_list)
    n_ce = len(logit_list)
    B = labels.shape[0]
    labels2d = labels.reshape(B, 1).astype(jnp.int32)

    def kernel(*refs):
        labels_ref = refs[0]
        feat_refs = refs[1:1 + n_tri]
        logit_refs = refs[1 + n_tri:1 + n_tri + n_ce]
        out_sum_ref, out_tri_ref, out_ce_ref = refs[1 + n_tri + n_ce:]

        lab_col = labels_ref[...]                       # (B, 1) int32
        lab_row = jnp.transpose(lab_col)                # (1, B) int32
        same = lab_col == lab_row                       # (B, B) bool  (same identity)

        # ---- batch-hard triplet loss over the feature heads (unrolled) ----
        tri_acc = jnp.zeros((1, 1), jnp.float32)
        for fr in feat_refs:
            x = fr[...].astype(jnp.float32)             # (B, D)
            sq = jnp.sum(x * x, axis=1, keepdims=True)  # (B, 1)
            # x @ x.T without an explicit transpose: contract dim 1 of both operands (MXU).
            gram = jax.lax.dot_general(
                x, x, (((1,), (1,)), ((), ())),
                preferred_element_type=jnp.float32)     # (B, B)
            dist2 = jnp.maximum(sq + jnp.transpose(sq) - 2.0 * gram, 0.0)

            # hard mining on squared distances (sqrt is monotone), sqrt only on (B,1) results
            ap2 = jnp.max(jnp.where(same, dist2, -jnp.inf), axis=1, keepdims=True)
            an2 = jnp.min(jnp.where(same, jnp.inf, dist2), axis=1, keepdims=True)
            dist_ap = jnp.sqrt(jnp.maximum(ap2, 1e-12))
            dist_an = jnp.sqrt(jnp.maximum(an2, 1e-12))

            # MarginRankingLoss(dist_an, dist_ap, y=1) == mean(relu(dist_ap - dist_an + margin))
            hinge = jnp.maximum(dist_ap - dist_an + MARGIN, 0.0)   # (B, 1)
            tri_acc = tri_acc + jnp.sum(hinge, keepdims=True) / B

        # ---- cross entropy over the logit heads (unrolled) ----
        ce_acc = jnp.zeros((1, 1), jnp.float32)
        for lr in logit_refs:
            z = lr[...].astype(jnp.float32)             # (B, C)
            m = jnp.max(z, axis=1, keepdims=True)
            lse = m + jnp.log(jnp.sum(jnp.exp(z - m), axis=1, keepdims=True))  # (B, 1)
            col = jax.lax.broadcasted_iota(jnp.int32, z.shape, 1)
            picked = jnp.sum(jnp.where(col == lab_col, z, 0.0), axis=1, keepdims=True)
            ce_acc = ce_acc + jnp.sum(lse - picked, keepdims=True) / B

        tri = tri_acc / n_tri
        ce = ce_acc / n_ce
        out_sum_ref[...] = tri + 2.0 * ce
        out_tri_ref[...] = tri
        out_ce_ref[...] = ce

    vmem = pl.BlockSpec(memory_space=pltpu.MemorySpace.VMEM)   # whole array resident in VMEM
    out_shape = (jax.ShapeDtypeStruct((1, 1), jnp.float32),) * 3

    call = pl.pallas_call(
        kernel,
        out_shape=out_shape,
        in_specs=[vmem] * (1 + n_tri + n_ce),
        out_specs=(vmem, vmem, vmem),
    )
    return call(labels2d, *feat_list, *logit_list)


# ----------------------------- public wrapper -----------------------------

def mgn_loss(outputs, labels, logger=None):
    """outputs: list of arrays. outputs[1:4] -> (B, D) features, outputs[4:] -> (B, C) logits."""
    feats = list(outputs[1:4])
    logits = list(outputs[4:])

    loss_sum, triplet, ce = _fused_mgn_loss(feats, logits, labels)
    loss_sum = loss_sum[0, 0]
    triplet = triplet[0, 0]
    ce = ce[0, 0]

    if logger is not None:
        # NOTE: float() forces a device->host sync; keep logger=None inside hot training loops.
        logger.info('\rtotal loss:%.2f  Triplet_Loss:%.2f  CrossEntropy_Loss:%.2f'
                    % (float(loss_sum), float(triplet), float(ce)))
    return loss_sum


# ----------------------------- pure-JAX reference (self-check) -----------------------------

def _ref_triplet(x, labels, margin):
    sq = jnp.sum(x * x, axis=1, keepdims=True)
    dist = jnp.sqrt(jnp.maximum(sq + sq.T - 2.0 * x @ x.T, 1e-12))
    same = labels[:, None] == labels[None, :]
    ap = jnp.max(jnp.where(same, dist, -jnp.inf), axis=1)
    an = jnp.min(jnp.where(same, jnp.inf, dist), axis=1)
    return jnp.mean(jnp.maximum(ap - an + margin, 0.0))


def _ref_ce(z, labels):
    lse = jax.scipy.special.logsumexp(z, axis=1)
    picked = z[jnp.arange(z.shape[0]), labels]
    return jnp.mean(lse - picked)


def _ref_mgn_loss(outputs, labels):
    tri = sum(_ref_triplet(o, labels, MARGIN) for o in outputs[1:4]) / 3.0
    ce = sum(_ref_ce(o, labels) for o in outputs[4:]) / len(outputs[4:])
    return tri + 2.0 * ce


# ----------------------------- main -----------------------------

if __name__ == "__main__":
    B, D, C = 8, 32, 16
    key = jax.random.PRNGKey(0)
    keys = jax.random.split(key, 8)

    # labels with repeated identities so triplet loss has both positives and negatives
    labels = jnp.array([0, 0, 1, 1, 2, 2, 3, 3], dtype=jnp.int32)

    feat_concat = jax.random.normal(keys[0], (B, 3 * D), jnp.float32)   # outputs[0], unused by loss
    feats = [jax.random.normal(keys[1 + i], (B, D), jnp.float32) for i in range(3)]
    logits = [jax.random.normal(keys[4 + i], (B, C), jnp.float32) for i in range(3)]
    outputs = [feat_concat] + feats + logits

    loss = mgn_loss(outputs, labels)          # logger=None -> no host-sync logging
    jax.block_until_ready(loss)

    ref = _ref_mgn_loss(outputs, labels)
    assert jnp.allclose(loss, ref, rtol=1e-4, atol=1e-4), (loss, ref)

    print("KERNEL_OK")
</pallas_src>

<mosaic_0001>
module attributes {stable_mosaic.version = 11 : i64} {
  func.func @kernel(%arg0: memref<8x1xi32, #tpu.memory_space<vmem>>, %arg1: memref<8x32xf32, #tpu.memory_space<vmem>>, %arg2: memref<8x32xf32, #tpu.memory_space<vmem>>, %arg3: memref<8x32xf32, #tpu.memory_space<vmem>>, %arg4: memref<8x16xf32, #tpu.memory_space<vmem>>, %arg5: memref<8x16xf32, #tpu.memory_space<vmem>>, %arg6: memref<8x16xf32, #tpu.memory_space<vmem>>, %arg7: memref<1x1xf32, #tpu.memory_space<vmem>>, %arg8: memref<1x1xf32, #tpu.memory_space<vmem>>, %arg9: memref<1x1xf32, #tpu.memory_space<vmem>>) attributes {dimension_semantics = [], scalar_prefetch = 0 : i64, scratch_operands = 0 : i64, tpu.core_type = #tpu.core_type<tc>} {
    %c0 = arith.constant 0 : index
    %c0_0 = arith.constant 0 : index
    %0 = vector.load %arg0[%c0, %c0_0] : memref<8x1xi32, #tpu.memory_space<vmem>>, vector<8x1xi32>
    %1 = tpu.transpose %0, [1, 0] : vector<8x1xi32> -> vector<1x8xi32>
    %2 = vector.broadcast %0 : vector<8x1xi32> to vector<8x8xi32>
    %3 = vector.broadcast %1 : vector<1x8xi32> to vector<8x8xi32>
    %4 = arith.cmpi eq, %2, %3 : vector<8x8xi32>
    %cst = arith.constant 0.000000e+00 : f32
    %5 = vector.broadcast %cst : f32 to vector<1x1xf32>
    %c0_1 = arith.constant 0 : index
    %c0_2 = arith.constant 0 : index
    %6 = vector.load %arg1[%c0_1, %c0_2] : memref<8x32xf32, #tpu.memory_space<vmem>>, vector<8x32xf32>
    %7 = arith.mulf %6, %6 : vector<8x32xf32>
    %cst_3 = arith.constant dense<0.000000e+00> : vector<8xf32>
    %8 = vector.multi_reduction <add>, %7, %cst_3 [1] : vector<8x32xf32> to vector<8xf32>
    %9 = vector.shape_cast %8 : vector<8xf32> to vector<8x1xf32>
    %cst_4 = arith.constant dense<0.000000e+00> : vector<8x8xf32>
    %10 = tpu.matmul %6, %6, %cst_4 {dimension_numbers = #tpu.dot_dimension_numbers<[1], [1], [0], [0], [0, 0, 1, 0], [], []>} : vector<8x32xf32>, vector<8x32xf32>, vector<8x8xf32> -> vector<8x8xf32>
    %11 = tpu.transpose %9, [1, 0] : vector<8x1xf32> -> vector<1x8xf32>
    %12 = vector.broadcast %9 : vector<8x1xf32> to vector<8x8xf32>
    %13 = vector.broadcast %11 : vector<1x8xf32> to vector<8x8xf32>
    %14 = arith.addf %12, %13 : vector<8x8xf32>
    %cst_5 = arith.constant 2.000000e+00 : f32
    %15 = vector.broadcast %cst_5 : f32 to vector<8x8xf32>
    %16 = arith.mulf %15, %10 : vector<8x8xf32>
    %17 = arith.subf %14, %16 : vector<8x8xf32>
    %cst_6 = arith.constant 0.000000e+00 : f32
    %18 = vector.broadcast %cst_6 : f32 to vector<8x8xf32>
    %19 = arith.maximumf %17, %18 : vector<8x8xf32>
    %cst_7 = arith.constant 0xFF800000 : f32
    %20 = vector.broadcast %cst_7 : f32 to vector<8x8xf32>
    %21 = arith.select %4, %19, %20 : vector<8x8xi1>, vector<8x8xf32>
    %cst_8 = arith.constant dense<0xFF800000> : vector<8xf32>
    %22 = vector.multi_reduction <maximumf>, %21, %cst_8 [1] : vector<8x8xf32> to vector<8xf32>
    %23 = vector.shape_cast %22 : vector<8xf32> to vector<8x1xf32>
    %cst_9 = arith.constant 0x7F800000 : f32
    %24 = vector.broadcast %cst_9 : f32 to vector<8x8xf32>
    %25 = arith.select %4, %24, %19 : vector<8x8xi1>, vector<8x8xf32>
    %cst_10 = arith.constant dense<0x7F800000> : vector<8xf32>
    %26 = vector.multi_reduction <minimumf>, %25, %cst_10 [1] : vector<8x8xf32> to vector<8xf32>
    %27 = vector.shape_cast %26 : vector<8xf32> to vector<8x1xf32>
    %cst_11 = arith.constant 9.99999996E-13 : f32
    %28 = vector.broadcast %cst_11 : f32 to vector<8x1xf32>
    %29 = arith.maximumf %23, %28 : vector<8x1xf32>
    %30 = math.sqrt %29 : vector<8x1xf32>
    %cst_12 = arith.constant 9.99999996E-13 : f32
    %31 = vector.broadcast %cst_12 : f32 to vector<8x1xf32>
    %32 = arith.maximumf %27, %31 : vector<8x1xf32>
    %33 = math.sqrt %32 : vector<8x1xf32>
    %34 = arith.subf %30, %33 : vector<8x1xf32>
    %cst_13 = arith.constant 1.200000e+00 : f32
    %35 = vector.broadcast %cst_13 : f32 to vector<8x1xf32>
    %36 = arith.addf %34, %35 : vector<8x1xf32>
    %cst_14 = arith.constant 0.000000e+00 : f32
    %37 = vector.broadcast %cst_14 : f32 to vector<8x1xf32>
    %38 = arith.maximumf %36, %37 : vector<8x1xf32>
    %39 = vector.shape_cast %38 : vector<8x1xf32> to vector<1x8x1xf32>
    %cst_15 = arith.constant dense<0.000000e+00> : vector<1xf32>
    %40 = vector.multi_reduction <add>, %39, %cst_15 [1, 2] : vector<1x8x1xf32> to vector<1xf32>
    %41 = vector.shape_cast %40 : vector<1xf32> to vector<1x1x1xf32>
    %42 = vector.extract %41[0, 0, 0] : f32 from vector<1x1x1xf32>
    %43 = vector.broadcast %42 : f32 to vector<1x1xf32>
    %cst_16 = arith.constant 8.000000e+00 : f32
    %44 = vector.broadcast %cst_16 : f32 to vector<1x1xf32>
    %45 = arith.divf %43, %44 : vector<1x1xf32>
    %46 = arith.addf %5, %45 : vector<1x1xf32>
    %c0_17 = arith.constant 0 : index
    %c0_18 = arith.constant 0 : index
    %47 = vector.load %arg2[%c0_17, %c0_18] : memref<8x32xf32, #tpu.memory_space<vmem>>, vector<8x32xf32>
    %48 = arith.mulf %47, %47 : vector<8x32xf32>
    %cst_19 = arith.constant dense<0.000000e+00> : vector<8xf32>
    %49 = vector.multi_reduction <add>, %48, %cst_19 [1] : vector<8x32xf32> to vector<8xf32>
    %50 = vector.shape_cast %49 : vector<8xf32> to vector<8x1xf32>
    %cst_20 = arith.constant dense<0.000000e+00> : vector<8x8xf32>
    %51 = tpu.matmul %47, %47, %cst_20 {dimension_numbers = #tpu.dot_dimension_numbers<[1], [1], [0], [0], [0, 0, 1, 0], [], []>} : vector<8x32xf32>, vector<8x32xf32>, vector<8x8xf32> -> vector<8x8xf32>
    %52 = tpu.transpose %50, [1, 0] : vector<8x1xf32> -> vector<1x8xf32>
    %53 = vector.broadcast %50 : vector<8x1xf32> to vector<8x8xf32>
    %54 = vector.broadcast %52 : vector<1x8xf32> to vector<8x8xf32>
    %55 = arith.addf %53, %54 : vector<8x8xf32>
    %cst_21 = arith.constant 2.000000e+00 : f32
    %56 = vector.broadcast %cst_21 : f32 to vector<8x8xf32>
    %57 = arith.mulf %56, %51 : vector<8x8xf32>
    %58 = arith.subf %55, %57 : vector<8x8xf32>
    %cst_22 = arith.constant 0.000000e+00 : f32
    %59 = vector.broadcast %cst_22 : f32 to vector<8x8xf32>
    %60 = arith.maximumf %58, %59 : vector<8x8xf32>
    %cst_23 = arith.constant 0xFF800000 : f32
    %61 = vector.broadcast %cst_23 : f32 to vector<8x8xf32>
    %62 = arith.select %4, %60, %61 : vector<8x8xi1>, vector<8x8xf32>
    %cst_24 = arith.constant dense<0xFF800000> : vector<8xf32>
    %63 = vector.multi_reduction <maximumf>, %62, %cst_24 [1] : vector<8x8xf32> to vector<8xf32>
    %64 = vector.shape_cast %63 : vector<8xf32> to vector<8x1xf32>
    %cst_25 = arith.constant 0x7F800000 : f32
    %65 = vector.broadcast %cst_25 : f32 to vector<8x8xf32>
    %66 = arith.select %4, %65, %60 : vector<8x8xi1>, vector<8x8xf32>
    %cst_26 = arith.constant dense<0x7F800000> : vector<8xf32>
    %67 = vector.multi_reduction <minimumf>, %66, %cst_26 [1] : vector<8x8xf32> to vector<8xf32>
    %68 = vector.shape_cast %67 : vector<8xf32> to vector<8x1xf32>
    %cst_27 = arith.constant 9.99999996E-13 : f32
    %69 = vector.broadcast %cst_27 : f32 to vector<8x1xf32>
    %70 = arith.maximumf %64, %69 : vector<8x1xf32>
    %71 = math.sqrt %70 : vector<8x1xf32>
    %cst_28 = arith.constant 9.99999996E-13 : f32
    %72 = vector.broadcast %cst_28 : f32 to vector<8x1xf32>
    %73 = arith.maximumf %68, %72 : vector<8x1xf32>
    %74 = math.sqrt %73 : vector<8x1xf32>
    %75 = arith.subf %71, %74 : vector<8x1xf32>
    %cst_29 = arith.constant 1.200000e+00 : f32
    %76 = vector.broadcast %cst_29 : f32 to vector<8x1xf32>
    %77 = arith.addf %75, %76 : vector<8x1xf32>
    %cst_30 = arith.constant 0.000000e+00 : f32
    %78 = vector.broadcast %cst_30 : f32 to vector<8x1xf32>
    %79 = arith.maximumf %77, %78 : vector<8x1xf32>
    %80 = vector.shape_cast %79 : vector<8x1xf32> to vector<1x8x1xf32>
    %cst_31 = arith.constant dense<0.000000e+00> : vector<1xf32>
    %81 = vector.multi_reduction <add>, %80, %cst_31 [1, 2] : vector<1x8x1xf32> to vector<1xf32>
    %82 = vector.shape_cast %81 : vector<1xf32> to vector<1x1x1xf32>
    %83 = vector.extract %82[0, 0, 0] : f32 from vector<1x1x1xf32>
    %84 = vector.broadcast %83 : f32 to vector<1x1xf32>
    %cst_32 = arith.constant 8.000000e+00 : f32
    %85 = vector.broadcast %cst_32 : f32 to vector<1x1xf32>
    %86 = arith.divf %84, %85 : vector<1x1xf32>
    %87 = arith.addf %46, %86 : vector<1x1xf32>
    %c0_33 = arith.constant 0 : index
    %c0_34 = arith.constant 0 : index
    %88 = vector.load %arg3[%c0_33, %c0_34] : memref<8x32xf32, #tpu.memory_space<vmem>>, vector<8x32xf32>
    %89 = arith.mulf %88, %88 : vector<8x32xf32>
    %cst_35 = arith.constant dense<0.000000e+00> : vector<8xf32>
    %90 = vector.multi_reduction <add>, %89, %cst_35 [1] : vector<8x32xf32> to vector<8xf32>
    %91 = vector.shape_cast %90 : vector<8xf32> to vector<8x1xf32>
    %cst_36 = arith.constant dense<0.000000e+00> : vector<8x8xf32>
    %92 = tpu.matmul %88, %88, %cst_36 {dimension_numbers = #tpu.dot_dimension_numbers<[1], [1], [0], [0], [0, 0, 1, 0], [], []>} : vector<8x32xf32>, vector<8x32xf32>, vector<8x8xf32> -> vector<8x8xf32>
    %93 = tpu.transpose %91, [1, 0] : vector<8x1xf32> -> vector<1x8xf32>
    %94 = vector.broadcast %91 : vector<8x1xf32> to vector<8x8xf32>
    %95 = vector.broadcast %93 : vector<1x8xf32> to vector<8x8xf32>
    %96 = arith.addf %94, %95 : vector<8x8xf32>
    %cst_37 = arith.constant 2.000000e+00 : f32
    %97 = vector.broadcast %cst_37 : f32 to vector<8x8xf32>
    %98 = arith.mulf %97, %92 : vector<8x8xf32>
    %99 = arith.subf %96, %98 : vector<8x8xf32>
    %cst_38 = arith.constant 0.000000e+00 : f32
    %100 = vector.broadcast %cst_38 : f32 to vector<8x8xf32>
    %101 = arith.maximumf %99, %100 : vector<8x8xf32>
    %cst_39 = arith.constant 0xFF800000 : f32
    %102 = vector.broadcast %cst_39 : f32 to vector<8x8xf32>
    %103 = arith.select %4, %101, %102 : vector<8x8xi1>, vector<8x8xf32>
    %cst_40 = arith.constant dense<0xFF800000> : vector<8xf32>
    %104 = vector.multi_reduction <maximumf>, %103, %cst_40 [1] : vector<8x8xf32> to vector<8xf32>
    %105 = vector.shape_cast %104 : vector<8xf32> to vector<8x1xf32>
    %cst_41 = arith.constant 0x7F800000 : f32
    %106 = vector.broadcast %cst_41 : f32 to vector<8x8xf32>
    %107 = arith.select %4, %106, %101 : vector<8x8xi1>, vector<8x8xf32>
    %cst_42 = arith.constant dense<0x7F800000> : vector<8xf32>
    %108 = vector.multi_reduction <minimumf>, %107, %cst_42 [1] : vector<8x8xf32> to vector<8xf32>
    %109 = vector.shape_cast %108 : vector<8xf32> to vector<8x1xf32>
    %cst_43 = arith.constant 9.99999996E-13 : f32
    %110 = vector.broadcast %cst_43 : f32 to vector<8x1xf32>
    %111 = arith.maximumf %105, %110 : vector<8x1xf32>
    %112 = math.sqrt %111 : vector<8x1xf32>
    %cst_44 = arith.constant 9.99999996E-13 : f32
    %113 = vector.broadcast %cst_44 : f32 to vector<8x1xf32>
    %114 = arith.maximumf %109, %113 : vector<8x1xf32>
    %115 = math.sqrt %114 : vector<8x1xf32>
    %116 = arith.subf %112, %115 : vector<8x1xf32>
    %cst_45 = arith.constant 1.200000e+00 : f32
    %117 = vector.broadcast %cst_45 : f32 to vector<8x1xf32>
    %118 = arith.addf %116, %117 : vector<8x1xf32>
    %cst_46 = arith.constant 0.000000e+00 : f32
    %119 = vector.broadcast %cst_46 : f32 to vector<8x1xf32>
    %120 = arith.maximumf %118, %119 : vector<8x1xf32>
    %121 = vector.shape_cast %120 : vector<8x1xf32> to vector<1x8x1xf32>
    %cst_47 = arith.constant dense<0.000000e+00> : vector<1xf32>
    %122 = vector.multi_reduction <add>, %121, %cst_47 [1, 2] : vector<1x8x1xf32> to vector<1xf32>
    %123 = vector.shape_cast %122 : vector<1xf32> to vector<1x1x1xf32>
    %124 = vector.extract %123[0, 0, 0] : f32 from vector<1x1x1xf32>
    %125 = vector.broadcast %124 : f32 to vector<1x1xf32>
    %cst_48 = arith.constant 8.000000e+00 : f32
    %126 = vector.broadcast %cst_48 : f32 to vector<1x1xf32>
    %127 = arith.divf %125, %126 : vector<1x1xf32>
    %128 = arith.addf %87, %127 : vector<1x1xf32>
    %cst_49 = arith.constant 0.000000e+00 : f32
    %129 = vector.broadcast %cst_49 : f32 to vector<1x1xf32>
    %c0_50 = arith.constant 0 : index
    %c0_51 = arith.constant 0 : index
    %130 = vector.load %arg4[%c0_50, %c0_51] : memref<8x16xf32, #tpu.memory_space<vmem>>, vector<8x16xf32>
    %cst_52 = arith.constant dense<0xFF800000> : vector<8xf32>
    %131 = vector.multi_reduction <maximumf>, %130, %cst_52 [1] : vector<8x16xf32> to vector<8xf32>
    %132 = vector.shape_cast %131 : vector<8xf32> to vector<8x1xf32>
    %133 = vector.broadcast %132 : vector<8x1xf32> to vector<8x16xf32>
    %134 = arith.subf %130, %133 : vector<8x16xf32>
    %135 = math.exp %134 : vector<8x16xf32>
    %cst_53 = arith.constant dense<0.000000e+00> : vector<8xf32>
    %136 = vector.multi_reduction <add>, %135, %cst_53 [1] : vector<8x16xf32> to vector<8xf32>
    %137 = vector.shape_cast %136 : vector<8xf32> to vector<8x1xf32>
    %138 = math.log %137 : vector<8x1xf32>
    %139 = arith.addf %132, %138 : vector<8x1xf32>
    %140 = tpu.iota {dimensions = array<i32: 1>} : vector<8x16xi32>
    %141 = vector.broadcast %0 : vector<8x1xi32> to vector<8x16xi32>
    %142 = arith.cmpi eq, %140, %141 : vector<8x16xi32>
    %cst_54 = arith.constant 0.000000e+00 : f32
    %143 = vector.broadcast %cst_54 : f32 to vector<8x16xf32>
    %144 = arith.select %142, %130, %143 : vector<8x16xi1>, vector<8x16xf32>
    %cst_55 = arith.constant dense<0.000000e+00> : vector<8xf32>
    %145 = vector.multi_reduction <add>, %144, %cst_55 [1] : vector<8x16xf32> to vector<8xf32>
    %146 = vector.shape_cast %145 : vector<8xf32> to vector<8x1xf32>
    %147 = arith.subf %139, %146 : vector<8x1xf32>
    %148 = vector.shape_cast %147 : vector<8x1xf32> to vector<1x8x1xf32>
    %cst_56 = arith.constant dense<0.000000e+00> : vector<1xf32>
    %149 = vector.multi_reduction <add>, %148, %cst_56 [1, 2] : vector<1x8x1xf32> to vector<1xf32>
    %150 = vector.shape_cast %149 : vector<1xf32> to vector<1x1x1xf32>
    %151 = vector.extract %150[0, 0, 0] : f32 from vector<1x1x1xf32>
    %152 = vector.broadcast %151 : f32 to vector<1x1xf32>
    %cst_57 = arith.constant 8.000000e+00 : f32
    %153 = vector.broadcast %cst_57 : f32 to vector<1x1xf32>
    %154 = arith.divf %152, %153 : vector<1x1xf32>
    %155 = arith.addf %129, %154 : vector<1x1xf32>
    %c0_58 = arith.constant 0 : index
    %c0_59 = arith.constant 0 : index
    %156 = vector.load %arg5[%c0_58, %c0_59] : memref<8x16xf32, #tpu.memory_space<vmem>>, vector<8x16xf32>
    %cst_60 = arith.constant dense<0xFF800000> : vector<8xf32>
    %157 = vector.multi_reduction <maximumf>, %156, %cst_60 [1] : vector<8x16xf32> to vector<8xf32>
    %158 = vector.shape_cast %157 : vector<8xf32> to vector<8x1xf32>
    %159 = vector.broadcast %158 : vector<8x1xf32> to vector<8x16xf32>
    %160 = arith.subf %156, %159 : vector<8x16xf32>
    %161 = math.exp %160 : vector<8x16xf32>
    %cst_61 = arith.constant dense<0.000000e+00> : vector<8xf32>
    %162 = vector.multi_reduction <add>, %161, %cst_61 [1] : vector<8x16xf32> to vector<8xf32>
    %163 = vector.shape_cast %162 : vector<8xf32> to vector<8x1xf32>
    %164 = math.log %163 : vector<8x1xf32>
    %165 = arith.addf %158, %164 : vector<8x1xf32>
    %166 = tpu.iota {dimensions = array<i32: 1>} : vector<8x16xi32>
    %167 = vector.broadcast %0 : vector<8x1xi32> to vector<8x16xi32>
    %168 = arith.cmpi eq, %166, %167 : vector<8x16xi32>
    %cst_62 = arith.constant 0.000000e+00 : f32
    %169 = vector.broadcast %cst_62 : f32 to vector<8x16xf32>
    %170 = arith.select %168, %156, %169 : vector<8x16xi1>, vector<8x16xf32>
    %cst_63 = arith.constant dense<0.000000e+00> : vector<8xf32>
    %171 = vector.multi_reduction <add>, %170, %cst_63 [1] : vector<8x16xf32> to vector<8xf32>
    %172 = vector.shape_cast %171 : vector<8xf32> to vector<8x1xf32>
    %173 = arith.subf %165, %172 : vector<8x1xf32>
    %174 = vector.shape_cast %173 : vector<8x1xf32> to vector<1x8x1xf32>
    %cst_64 = arith.constant dense<0.000000e+00> : vector<1xf32>
    %175 = vector.multi_reduction <add>, %174, %cst_64 [1, 2] : vector<1x8x1xf32> to vector<1xf32>
    %176 = vector.shape_cast %175 : vector<1xf32> to vector<1x1x1xf32>
    %177 = vector.extract %176[0, 0, 0] : f32 from vector<1x1x1xf32>
    %178 = vector.broadcast %177 : f32 to vector<1x1xf32>
    %cst_65 = arith.constant 8.000000e+00 : f32
    %179 = vector.broadcast %cst_65 : f32 to vector<1x1xf32>
    %180 = arith.divf %178, %179 : vector<1x1xf32>
    %181 = arith.addf %155, %180 : vector<1x1xf32>
    %c0_66 = arith.constant 0 : index
    %c0_67 = arith.constant 0 : index
    %182 = vector.load %arg6[%c0_66, %c0_67] : memref<8x16xf32, #tpu.memory_space<vmem>>, vector<8x16xf32>
    %cst_68 = arith.constant dense<0xFF800000> : vector<8xf32>
    %183 = vector.multi_reduction <maximumf>, %182, %cst_68 [1] : vector<8x16xf32> to vector<8xf32>
    %184 = vector.shape_cast %183 : vector<8xf32> to vector<8x1xf32>
    %185 = vector.broadcast %184 : vector<8x1xf32> to vector<8x16xf32>
    %186 = arith.subf %182, %185 : vector<8x16xf32>
    %187 = math.exp %186 : vector<8x16xf32>
    %cst_69 = arith.constant dense<0.000000e+00> : vector<8xf32>
    %188 = vector.multi_reduction <add>, %187, %cst_69 [1] : vector<8x16xf32> to vector<8xf32>
    %189 = vector.shape_cast %188 : vector<8xf32> to vector<8x1xf32>
    %190 = math.log %189 : vector<8x1xf32>
    %191 = arith.addf %184, %190 : vector<8x1xf32>
    %192 = tpu.iota {dimensions = array<i32: 1>} : vector<8x16xi32>
    %193 = vector.broadcast %0 : vector<8x1xi32> to vector<8x16xi32>
    %194 = arith.cmpi eq, %192, %193 : vector<8x16xi32>
    %cst_70 = arith.constant 0.000000e+00 : f32
    %195 = vector.broadcast %cst_70 : f32 to vector<8x16xf32>
    %196 = arith.select %194, %182, %195 : vector<8x16xi1>, vector<8x16xf32>
    %cst_71 = arith.constant dense<0.000000e+00> : vector<8xf32>
    %197 = vector.multi_reduction <add>, %196, %cst_71 [1] : vector<8x16xf32> to vector<8xf32>
    %198 = vector.shape_cast %197 : vector<8xf32> to vector<8x1xf32>
    %199 = arith.subf %191, %198 : vector<8x1xf32>
    %200 = vector.shape_cast %199 : vector<8x1xf32> to vector<1x8x1xf32>
    %cst_72 = arith.constant dense<0.000000e+00> : vector<1xf32>
    %201 = vector.multi_reduction <add>, %200, %cst_72 [1, 2] : vector<1x8x1xf32> to vector<1xf32>
    %202 = vector.shape_cast %201 : vector<1xf32> to vector<1x1x1xf32>
    %203 = vector.extract %202[0, 0, 0] : f32 from vector<1x1x1xf32>
    %204 = vector.broadcast %203 : f32 to vector<1x1xf32>
    %cst_73 = arith.constant 8.000000e+00 : f32
    %205 = vector.broadcast %cst_73 : f32 to vector<1x1xf32>
    %206 = arith.divf %204, %205 : vector<1x1xf32>
    %207 = arith.addf %181, %206 : vector<1x1xf32>
    %cst_74 = arith.constant 3.000000e+00 : f32
    %208 = vector.broadcast %cst_74 : f32 to vector<1x1xf32>
    %209 = arith.divf %128, %208 : vector<1x1xf32>
    %cst_75 = arith.constant 3.000000e+00 : f32
    %210 = vector.broadcast %cst_75 : f32 to vector<1x1xf32>
    %211 = arith.divf %207, %210 : vector<1x1xf32>
    %cst_76 = arith.constant 2.000000e+00 : f32
    %212 = vector.broadcast %cst_76 : f32 to vector<1x1xf32>
    %213 = arith.mulf %212, %211 : vector<1x1xf32>
    %214 = arith.addf %209, %213 : vector<1x1xf32>
    %c0_77 = arith.constant 0 : index
    %c0_78 = arith.constant 0 : index
    %215 = vector.load %arg7[%c0_77, %c0_78] : memref<1x1xf32, #tpu.memory_space<vmem>>, vector<1x1xf32>
    tpu.vector_store %arg7[%c0_77, %c0_78], %214 {strides = array<i32>} : memref<1x1xf32, #tpu.memory_space<vmem>>, vector<1x1xf32>,
    %c0_79 = arith.constant 0 : index
    %c0_80 = arith.constant 0 : index
    %216 = vector.load %arg8[%c0_79, %c0_80] : memref<1x1xf32, #tpu.memory_space<vmem>>, vector<1x1xf32>
    tpu.vector_store %arg8[%c0_79, %c0_80], %209 {strides = array<i32>} : memref<1x1xf32, #tpu.memory_space<vmem>>, vector<1x1xf32>,
    %c0_81 = arith.constant 0 : index
    %c0_82 = arith.constant 0 : index
    %217 = vector.load %arg9[%c0_81, %c0_82] : memref<1x1xf32, #tpu.memory_space<vmem>>, vector<1x1xf32>
    tpu.vector_store %arg9[%c0_81, %c0_82], %211 {strides = array<i32>} : memref<1x1xf32, #tpu.memory_space<vmem>>, vector<1x1xf32>,
    return
  }
}

</mosaic_0001>

<llo_original>
// kernel: tpu_custom_call.1
$region0: #{tpu_custom_call.1}
  #allocation0 [shape = 'u32[]', space=smem, size = 0x4, offset = 0x4, fixed_abs, tag = 'smem constant byte address 0x4 - core index']
  #allocation1 [shape = 'u32[144,128]{1,0:T(1,128)}', space=vmem, size = 0x12000, scoped, tag = 'internal scratch']
  %s0 = inlined_call_operand.vmem [shape: s32[8,1], index: 0, kind: input, shape index: {}]
  %s1 = inlined_call_operand.vmem [shape: f32[8,32], index: 1, kind: input, shape index: {}]
  %s2 = inlined_call_operand.vmem [shape: f32[8,32], index: 2, kind: input, shape index: {}]
  %s3 = inlined_call_operand.hbm [shape: f32[8,32], index: 3, kind: input, shape index: {}]
  %s4 = inlined_call_operand.vmem [shape: f32[8,16], index: 4, kind: input, shape index: {}]
  %s5 = inlined_call_operand.hbm [shape: f32[8,16], index: 5, kind: input, shape index: {}]
  %s6 = inlined_call_operand.hbm [shape: f32[8,16], index: 6, kind: input, shape index: {}]
  %s7 = inlined_call_operand.hbm [shape: f32[1,1], index: 7, kind: output, shape index: {0}]
  %s8 = inlined_call_operand.hbm [shape: f32[1,1], index: 8, kind: output, shape index: {1}]
  %s9 = inlined_call_operand.hbm [shape: f32[1,1], index: 9, kind: output, shape index: {2}]
  %10 = xla_tuple %s7, %s8, %s9
  %s11 = sld [smem:[#allocation0]]
  $region66: #{tpu_custom_call.1} parent=0
    _
  %s13 = ssub.s32 1, %s11
  %s14 = scalar_select 0, %s13, %s11
  $region1: #{tpu_custom_call.1} parent=0
    #allocation2 [shape = 'u8[4096]{0}', space=vmem, size = 0x1000, scoped, tag = 'input window, operand 3, single buffered']
    #allocation3 [shape = 's32[1]{0}', space=sflag, size = 0x4, scoped, tag = 'scoped memory for tpu_custom_call.1']
    #allocation4 [shape = 's32[1]{0}', space=sflag, size = 0x4, scoped, tag = 'scoped memory for tpu_custom_call.1']
    #allocation5 [shape = 'u8[4096]{0}', space=vmem, size = 0x1000, scoped, tag = 'input window, operand 5, single buffered']
    #allocation6 [shape = 's32[1]{0}', space=sflag, size = 0x4, scoped, tag = 'scoped memory for tpu_custom_call.1']
    #allocation7 [shape = 'u8[4096]{0}', space=vmem, size = 0x1000, scoped, tag = 'input window, operand 6, single buffered']
    #allocation8 [shape = 'u8[512]{0}', space=vmem, size = 0x400, scoped, tag = 'output window, operand 0, single buffered']
    #allocation9 [shape = 'u8[512]{0}', space=vmem, size = 0x400, scoped, tag = 'output window, operand 1, single buffered']
    #allocation10 [shape = 's32[1]{0}', space=sflag, size = 0x4, scoped, tag = 'scoped memory for tpu_custom_call.1']
    #allocation11 [shape = 'u8[512]{0}', space=vmem, size = 0x400, scoped, tag = 'output window, operand 2, single buffered']
    %15 = vsyncpa [#allocation3], 0
    %16 = vsyncpa [#allocation6], 0
    %17 = vsyncpa [#allocation4], 0
    %18 = vsyncpa [#allocation10], 0
    // Predicated region
    $region2: #{tpu_custom_call.1} parent=1 // pred_check
      _
    $region3: #{tpu_custom_call.1} parent=1 // pred_check_branch
      %20 = sbr.rel (0) target = $region5
    $region4: #{tpu_custom_call.1} parent=1 // pred_region
      _
    $region5: #{tpu_custom_call.1} parent=1 // pred_fallthru
      _
    // Predicated region
    $region6: #{tpu_custom_call.1} parent=1 // pred_check
      _
    $region7: #{tpu_custom_call.1} parent=1 // pred_check_branch
      %22 = sbr.rel (0) target = $region9
    $region8: #{tpu_custom_call.1} parent=1 // pred_region
      _
    $region9: #{tpu_custom_call.1} parent=1 // pred_fallthru
      _
    // Predicated region
    $region10: #{tpu_custom_call.1} parent=1 // pred_check
      _
    $region11: #{tpu_custom_call.1} parent=1 // pred_check_branch
      %24 = sbr.rel (0) target = $region13
    $region12: #{tpu_custom_call.1} parent=1 // pred_region
      _
    $region13: #{tpu_custom_call.1} parent=1 // pred_fallthru
      _
    // Predicated region
    $region14: #{tpu_custom_call.1} parent=1 // pred_check
      _
    $region15: #{tpu_custom_call.1} parent=1 // pred_check_branch
      %26 = sbr.rel (0) target = $region17
    $region16: #{tpu_custom_call.1} parent=1 // pred_region
      %s28 = ssub.s32 128, 128
      %29 = vsyncadd [#allocation3], %s28
      %s31 = sshll.u32 [#allocation2], 4
      %s32 = int_to_ptr.vmem [resolvable:$true] %s31
      %34 = dma.hbm_to_vmem [thread:$0]  %s3, 128, %s32, [#allocation3]
    $region17: #{tpu_custom_call.1} parent=1 // pred_fallthru
      _
    // Predicated region
    $region18: #{tpu_custom_call.1} parent=1 // pred_check
      _
    $region19: #{tpu_custom_call.1} parent=1 // pred_check_branch
      %36 = sbr.rel (0) target = $region21
    $region20: #{tpu_custom_call.1} parent=1 // pred_region
      _
    $region21: #{tpu_custom_call.1} parent=1 // pred_fallthru
      _
    // Predicated region
    $region22: #{tpu_custom_call.1} parent=1 // pred_check
      _
    $region23: #{tpu_custom_call.1} parent=1 // pred_check_branch
      %38 = sbr.rel (0) target = $region25
    $region24: #{tpu_custom_call.1} parent=1 // pred_region
      %s40 = ssub.s32 128, 128
      %41 = vsyncadd [#allocation6], %s40
      %s43 = sshll.u32 [#allocation5], 4
      %s44 = int_to_ptr.vmem [resolvable:$true] %s43
      %46 = dma.hbm_to_vmem [thread:$0]  %s5, 128, %s44, [#allocation6]
    $region25: #{tpu_custom_call.1} parent=1 // pred_fallthru
      _
    // Predicated region
    $region26: #{tpu_custom_call.1} parent=1 // pred_check
      _
    $region27: #{tpu_custom_call.1} parent=1 // pred_check_branch
      %48 = sbr.rel (0) target = $region29
    $region28: #{tpu_custom_call.1} parent=1 // pred_region
      %s50 = ssub.s32 128, 128
      %51 = vsyncadd [#allocation6], %s50
      %s53 = sshll.u32 [#allocation7], 4
      %s54 = int_to_ptr.vmem [resolvable:$true] %s53
      %56 = dma.hbm_to_vmem [thread:$0]  %s6, 128, %s54, [#allocation6]
    $region29: #{tpu_custom_call.1} parent=1 // pred_fallthru
      _
    // Predicated region
    $region30: #{tpu_custom_call.1} parent=1 // pred_check
      _
    $region31: #{tpu_custom_call.1} parent=1 // pred_check_branch
      %58 = sbr.rel (0) target = $region33
    $region32: #{tpu_custom_call.1} parent=1 // pred_region
      %59 = dma.done [#allocation3], 128
    $region33: #{tpu_custom_call.1} parent=1 // pred_fallthru
      _
    // Predicated region
    $region34: #{tpu_custom_call.1} parent=1 // pred_check
      _
    $region35: #{tpu_custom_call.1} parent=1 // pred_check_branch
      %61 = sbr.rel (0) target = $region37
    $region36: #{tpu_custom_call.1} parent=1 // pred_region
      %62 = dma.done [#allocation6], 128
    $region37: #{tpu_custom_call.1} parent=1 // pred_fallthru
      _
    // Predicated region
    $region38: #{tpu_custom_call.1} parent=1 // pred_check
      _
    $region39: #{tpu_custom_call.1} parent=1 // pred_check_branch
      %64 = sbr.rel (0) target = $region41
    $region40: #{tpu_custom_call.1} parent=1 // pred_region
      %65 = dma.done [#allocation6], 128
    $region41: #{tpu_custom_call.1} parent=1 // pred_fallthru
      _
    %v66 = vld [vmem:[%s0] sm:$0xff]
    %67 = vxpose.xlu0.b32.start [1/16] %v66, 128
    %68 = vxpose.xlu0.b32.cont [2/16] 0, 128
    %69 = vxpose.xlu0.b32.cont [3/16] 0, 128
    %70 = vxpose.xlu0.b32.cont [4/16] 0, 128
    %71 = vxpose.xlu0.b32.cont [5/16] 0, 128
    %72 = vxpose.xlu0.b32.cont [6/16] 0, 128
    %73 = vxpose.xlu0.b32.cont [7/16] 0, 128
    %74 = vxpose.xlu0.b32.cont [8/16] 0, 128
    %75 = vxpose.xlu0.b32.cont [9/16] 0, 128
    %76 = vxpose.xlu0.b32.cont [10/16] 0, 128
    %77 = vxpose.xlu0.b32.cont [11/16] 0, 128
    %78 = vxpose.xlu0.b32.cont [12/16] 0, 128
    %79 = vxpose.xlu0.b32.cont [13/16] 0, 128
    %80 = vxpose.xlu0.b32.cont [14/16] 0, 128
    %81 = vxpose.xlu0.b32.cont [15/16] 0, 128
    %82 = vxpose.xlu0.b32.end [16/16] 0, 128
    %v83 = vpop.trf.xlu0
    %v84 = vpop.trf.xlu0
    %v85 = vpop.trf.xlu0
    %v86 = vpop.trf.xlu0
    %v87 = vpop.trf.xlu0
    %v88 = vpop.trf.xlu0
    %v89 = vpop.trf.xlu0
    %v90 = vpop.trf.xlu0
    %v91 = vpop.trf.xlu0
    %v92 = vpop.trf.xlu0
    %v93 = vpop.trf.xlu0
    %v94 = vpop.trf.xlu0
    %v95 = vpop.trf.xlu0
    %v96 = vpop.trf.xlu0
    %v97 = vpop.trf.xlu0
    %v98 = vpop.trf.xlu0
    %99 = vset.pattern.permute.xlu0 0
    %100 = vperm.xlu0 %99, %v66
    %v101 = vpop.permute.xlu0 %100
    %v102 = vlaneseq
    %v103 = vshrl.u32 %v102, 7
    %v104 = vsub.s32 0, %v103
    %v105 = vrot.slane %v83, %v104
    %vm106 = vcmp.eq.s32.totalorder %v101, %v105
    %v107 = vld [vmem:[%s1] sm:$0xff]
    %v108 = vmul.f32 %v107, %v107
    %vm109 = vcmask 261120
    %v110 = vsel %vm109, %v108, 0.0
    %111 = vadd.xlane.f32.xlu0 %v110
    %v112 = vpop.xlane.xlu0 %111
    %v114 = vsel %vm109, %v107, 0
    %116 = vmatprep.subr.mxu0 0.0
    %117 = vmatpush1.xpose.msra.mxu0 %v114
    %118 = vmatprep.subr.mxu0 0.0
    %119 = vmatpush1.xpose.msra.mxu0 0.0
    %120 = vmatprep.subr.mxu0 0.0
    %121 = vmatpush1.xpose.msra.mxu0 0.0
    %122 = vmatprep.subr.mxu0 0.0
    %123 = vmatpush1.xpose.msra.mxu0 0.0
    %124 = vmatprep.subr.mxu0 0.0
    %125 = vmatpush1.xpose.msra.mxu0 0.0
    %126 = vmatprep.subr.mxu0 0.0
    %127 = vmatpush1.xpose.msra.mxu0 0.0
    %128 = vmatprep.subr.mxu0 0.0
    %129 = vmatpush1.xpose.msra.mxu0 0.0
    %130 = vmatprep.subr.mxu0 0.0
    %131 = vmatpush1.xpose.msra.mxu0 0.0
    %132 = vmatprep.subr.mxu0 0.0
    %133 = vmatpush1.xpose.msra.mxu0 0.0
    %134 = vmatprep.subr.mxu0 0.0
    %135 = vmatpush1.xpose.msra.mxu0 0.0
    %136 = vmatprep.subr.mxu0 0.0
    %137 = vmatpush1.xpose.msra.mxu0 0.0
    %138 = vmatprep.subr.mxu0 0.0
    %139 = vmatpush1.xpose.msra.mxu0 0.0
    %140 = vmatprep.subr.mxu0 0.0
    %141 = vmatpush1.xpose.msra.mxu0 0.0
    %142 = vmatprep.subr.mxu0 0.0
    %143 = vmatpush1.xpose.msra.mxu0 0.0
    %144 = vmatprep.subr.mxu0 0.0
    %145 = vmatpush1.xpose.msra.mxu0 0.0
    %146 = vmatprep.subr.mxu0 0.0
    %147 = vmatpush1.xpose.msra.mxu0 0.0
    %148 = vmatprep.subr.mxu0 0.0
    %149 = vmatpush1.xpose.msra.mxu0 0.0
    %150 = vmatprep.subr.mxu0 0.0
    %151 = vmatpush1.xpose.msra.mxu0 0.0
    %152 = vmatprep.subr.mxu0 0.0
    %153 = vmatpush1.xpose.msra.mxu0 0.0
    %154 = vmatprep.subr.mxu0 0.0
    %155 = vmatpush1.xpose.msra.mxu0 0.0
    %156 = vmatprep.subr.mxu0 0.0
    %157 = vmatpush1.xpose.msra.mxu0 0.0
    %158 = vmatprep.subr.mxu0 0.0
    %159 = vmatpush1.xpose.msra.mxu0 0.0
    %160 = vmatprep.subr.mxu0 0.0
    %161 = vmatpush1.xpose.msra.mxu0 0.0
    %162 = vmatprep.subr.mxu0 0.0
    %163 = vmatpush1.xpose.msra.mxu0 0.0
    %164 = vmatprep.subr.mxu0 0.0
    %165 = vmatpush1.xpose.msra.mxu0 0.0
    %166 = vmatprep.subr.mxu0 0.0
    %167 = vmatpush1.xpose.msra.mxu0 0.0
    %168 = vmatprep.subr.mxu0 0.0
    %169 = vmatpush1.xpose.msra.mxu0 0.0
    %170 = vmatprep.subr.mxu0 0.0
    %171 = vmatpush1.xpose.msra.mxu0 0.0
    %172 = vmatprep.subr.mxu0 0.0
    %173 = vmatpush1.xpose.msra.mxu0 0.0
    %174 = vmatprep.subr.mxu0 0.0
    %175 = vmatpush1.xpose.msra.mxu0 0.0
    %176 = vmatprep.subr.mxu0 0.0
    %177 = vmatpush1.xpose.msra.mxu0 0.0
    %178 = vmatprep.subr.mxu0 0.0
    %179 = vmatpush1.xpose.msra.mxu0 0.0
    %180 = vmatprep.mubr.f32.mxu0 0.0
    %181 = vmatmul.mubr.f32.gmra.mrb[0].mxu0 %v114
    %v182 = vpop.f32.mrb[0].mxu0
    %v183 = vadd.f32 0.0, %v182
    %v184 = vpop.f32.mrb[0].mxu0
    %185 = vdwg.mxu0
    %186 = vxpose.xlu0.b32.start [1/16] %v112, 128
    %187 = vxpose.xlu0.b32.cont [2/16] 0.0, 128
    %188 = vxpose.xlu0.b32.cont [3/16] 0.0, 128
    %189 = vxpose.xlu0.b32.cont [4/16] 0.0, 128
    %190 = vxpose.xlu0.b32.cont [5/16] 0.0, 128
    %191 = vxpose.xlu0.b32.cont [6/16] 0.0, 128
    %192 = vxpose.xlu0.b32.cont [7/16] 0.0, 128
    %193 = vxpose.xlu0.b32.cont [8/16] 0.0, 128
    %194 = vxpose.xlu0.b32.cont [9/16] 0.0, 128
    %195 = vxpose.xlu0.b32.cont [10/16] 0.0, 128
    %196 = vxpose.xlu0.b32.cont [11/16] 0.0, 128
    %197 = vxpose.xlu0.b32.cont [12/16] 0.0, 128
    %198 = vxpose.xlu0.b32.cont [13/16] 0.0, 128
    %199 = vxpose.xlu0.b32.cont [14/16] 0.0, 128
    %200 = vxpose.xlu0.b32.cont [15/16] 0.0, 128
    %201 = vxpose.xlu0.b32.end [16/16] 0.0, 128
    %v202 = vpop.trf.xlu0
    %v203 = vpop.trf.xlu0
    %v204 = vpop.trf.xlu0
    %v205 = vpop.trf.xlu0
    %v206 = vpop.trf.xlu0
    %v207 = vpop.trf.xlu0
    %v208 = vpop.trf.xlu0
    %v209 = vpop.trf.xlu0
    %v210 = vpop.trf.xlu0
    %v211 = vpop.trf.xlu0
    %v212 = vpop.trf.xlu0
    %v213 = vpop.trf.xlu0
    %v214 = vpop.trf.xlu0
    %v215 = vpop.trf.xlu0
    %v216 = vpop.trf.xlu0
    %v217 = vpop.trf.xlu0
    %v218 = vlaneseq
    %v219 = vshrl.u32 %v218, 7
    %v220 = vsub.s32 0, %v219
    %v221 = vrot.slane %v202, %v220
    %v222 = vadd.f32 %v112, %v221
    %v223 = vmul.f32 %v183, 2.0
    %v224 = vsub.f32 %v222, %v223
    %v225 = vmax.f32 %v224, 0.0
    %v226 = vsel %vm106, %v225, -inf
    %vm227 = vcmask 64512
    %v228 = vsel %vm227, %v226, -inf
    %229 = vmax.xlane.f32.xlu0 %v228
    %v230 = vpop.xlane.xlu0 %229
    %v231 = vsel %vm106, inf, %v225
    %v232 = vsel %vm227, %v231, inf
    %233 = vmin.xlane.f32.xlu0 %v232
    %v234 = vpop.xlane.xlu0 %233
    %v235 = vmax.f32 %v230, 1e-12
    %v236 = vrsqrt.pop %v235
    %v237 = vmul.f32 %v235, %v236
    %vm238 = vcmp.eq.f32.partialorder %v235, inf
    %v239 = vsel %vm238, %v235, %v237
    %vm240 = vcmp.eq.f32.partialorder %v235, 0.0
    %v241 = vand.u32 %v235, 2147483648
    %v242 = vsel %vm240, %v241, %v239
    %v243 = vmax.f32 %v234, 1e-12
    %v244 = vrsqrt.pop %v243
    %v245 = vmul.f32 %v243, %v244
    %vm246 = vcmp.eq.f32.partialorder %v243, inf
    %v247 = vsel %vm246, %v243, %v245
    %vm248 = vcmp.eq.f32.partialorder %v243, 0.0
    %v249 = vand.u32 %v243, 2147483648
    %v250 = vsel %vm248, %v249, %v247
    %v251 = vsub.f32 %v242, %v250
    %v252 = vadd.f32 %v251, 1.2
    %v253 = vmax.f32 %v252, 0.0
    %vm254 = vcmask 7168
    %v255 = vsel %vm254, %v253, 0.0
    %256 = vadd.xlane.f32.xlu0 %v255
    %v257 = vpop.xlane.xlu0 %256
    %v258 = vrot.slane %v257, 4
    %v259 = vadd.f32 %v257, %v258
    %v260 = vrot.slane %v259, 2
    %v261 = vadd.f32 %v259, %v260
    %v262 = vrot.slane %v261, 1
    %v263 = vadd.f32 %v261, %v262
    %s264 = vtos %v263
    %v265 = vstv %s264
    %v266 = vrcp.pop 8.0
    %v267 = vmul.f32 %v265, %v266
    %v268 = vadd.f32 %v267, 0.0
    %v269 = vld [vmem:[%s2] sm:$0xff]
    %v270 = vmul.f32 %v269, %v269
    %v271 = vsel %vm109, %v270, 0.0
    %272 = vadd.xlane.f32.xlu0 %v271
    %v273 = vpop.xlane.xlu0 %272
    %v275 = vsel %vm109, %v269, 0
    %277 = vmatprep.subr.mxu0 0.0
    %278 = vmatpush1.xpose.msra.mxu0 %v275
    %279 = vmatprep.subr.mxu0 0.0
    %280 = vmatpush1.xpose.msra.mxu0 0.0
    %281 = vmatprep.subr.mxu0 0.0
    %282 = vmatpush1.xpose.msra.mxu0 0.0
    %283 = vmatprep.subr.mxu0 0.0
    %284 = vmatpush1.xpose.msra.mxu0 0.0
    %285 = vmatprep.subr.mxu0 0.0
    %286 = vmatpush1.xpose.msra.mxu0 0.0
    %287 = vmatprep.subr.mxu0 0.0
    %288 = vmatpush1.xpose.msra.mxu0 0.0
    %289 = vmatprep.subr.mxu0 0.0
    %290 = vmatpush1.xpose.msra.mxu0 0.0
    %291 = vmatprep.subr.mxu0 0.0
    %292 = vmatpush1.xpose.msra.mxu0 0.0
    %293 = vmatprep.subr.mxu0 0.0
    %294 = vmatpush1.xpose.msra.mxu0 0.0
    %295 = vmatprep.subr.mxu0 0.0
    %296 = vmatpush1.xpose.msra.mxu0 0.0
    %297 = vmatprep.subr.mxu0 0.0
    %298 = vmatpush1.xpose.msra.mxu0 0.0
    %299 = vmatprep.subr.mxu0 0.0
    %300 = vmatpush1.xpose.msra.mxu0 0.0
    %301 = vmatprep.subr.mxu0 0.0
    %302 = vmatpush1.xpose.msra.mxu0 0.0
    %303 = vmatprep.subr.mxu0 0.0
    %304 = vmatpush1.xpose.msra.mxu0 0.0
    %305 = vmatprep.subr.mxu0 0.0
    %306 = vmatpush1.xpose.msra.mxu0 0.0
    %307 = vmatprep.subr.mxu0 0.0
    %308 = vmatpush1.xpose.msra.mxu0 0.0
    %309 = vmatprep.subr.mxu0 0.0
    %310 = vmatpush1.xpose.msra.mxu0 0.0
    %311 = vmatprep.subr.mxu0 0.0
    %312 = vmatpush1.xpose.msra.mxu0 0.0
    %313 = vmatprep.subr.mxu0 0.0
    %314 = vmatpush1.xpose.msra.mxu0 0.0
    %315 = vmatprep.subr.mxu0 0.0
    %316 = vmatpush1.xpose.msra.mxu0 0.0
    %317 = vmatprep.subr.mxu0 0.0
    %318 = vmatpush1.xpose.msra.mxu0 0.0
    %319 = vmatprep.subr.mxu0 0.0
    %320 = vmatpush1.xpose.msra.mxu0 0.0
    %321 = vmatprep.subr.mxu0 0.0
    %322 = vmatpush1.xpose.msra.mxu0 0.0
    %323 = vmatprep.subr.mxu0 0.0
    %324 = vmatpush1.xpose.msra.mxu0 0.0
    %325 = vmatprep.subr.mxu0 0.0
    %326 = vmatpush1.xpose.msra.mxu0 0.0
    %327 = vmatprep.subr.mxu0 0.0
    %328 = vmatpush1.xpose.msra.mxu0 0.0
    %329 = vmatprep.subr.mxu0 0.0
    %330 = vmatpush1.xpose.msra.mxu0 0.0
    %331 = vmatprep.subr.mxu0 0.0
    %332 = vmatpush1.xpose.msra.mxu0 0.0
    %333 = vmatprep.subr.mxu0 0.0
    %334 = vmatpush1.xpose.msra.mxu0 0.0
    %335 = vmatprep.subr.mxu0 0.0
    %336 = vmatpush1.xpose.msra.mxu0 0.0
    %337 = vmatprep.subr.mxu0 0.0
    %338 = vmatpush1.xpose.msra.mxu0 0.0
    %339 = vmatprep.subr.mxu0 0.0
    %340 = vmatpush1.xpose.msra.mxu0 0.0
    %341 = vmatprep.mubr.f32.mxu0 0.0
    %342 = vmatmul.mubr.f32.gmra.mrb[0].mxu0 %v275
    %v343 = vpop.f32.mrb[0].mxu0
    %v344 = vadd.f32 0.0, %v343
    %v345 = vpop.f32.mrb[0].mxu0
    %346 = vdwg.mxu0
    %347 = vxpose.xlu0.b32.start [1/16] %v273, 128
    %348 = vxpose.xlu0.b32.cont [2/16] 0.0, 128
    %349 = vxpose.xlu0.b32.cont [3/16] 0.0, 128
    %350 = vxpose.xlu0.b32.cont [4/16] 0.0, 128
    %351 = vxpose.xlu0.b32.cont [5/16] 0.0, 128
    %352 = vxpose.xlu0.b32.cont [6/16] 0.0, 128
    %353 = vxpose.xlu0.b32.cont [7/16] 0.0, 128
    %354 = vxpose.xlu0.b32.cont [8/16] 0.0, 128
    %355 = vxpose.xlu0.b32.cont [9/16] 0.0, 128
    %356 = vxpose.xlu0.b32.cont [10/16] 0.0, 128
    %357 = vxpose.xlu0.b32.cont [11/16] 0.0, 128
    %358 = vxpose.xlu0.b32.cont [12/16] 0.0, 128
    %359 = vxpose.xlu0.b32.cont [13/16] 0.0, 128
    %360 = vxpose.xlu0.b32.cont [14/16] 0.0, 128
    %361 = vxpose.xlu0.b32.cont [15/16] 0.0, 128
    %362 = vxpose.xlu0.b32.end [16/16] 0.0, 128
    %v363 = vpop.trf.xlu0
    %v364 = vpop.trf.xlu0
    %v365 = vpop.trf.xlu0
    %v366 = vpop.trf.xlu0
    %v367 = vpop.trf.xlu0
    %v368 = vpop.trf.xlu0
    %v369 = vpop.trf.xlu0
    %v370 = vpop.trf.xlu0
    %v371 = vpop.trf.xlu0
    %v372 = vpop.trf.xlu0
    %v373 = vpop.trf.xlu0
    %v374 = vpop.trf.xlu0
    %v375 = vpop.trf.xlu0
    %v376 = vpop.trf.xlu0
    %v377 = vpop.trf.xlu0
    %v378 = vpop.trf.xlu0
    %v379 = vlaneseq
    %v380 = vshrl.u32 %v379, 7
    %v381 = vsub.s32 0, %v380
    %v382 = vrot.slane %v363, %v381
    %v383 = vadd.f32 %v273, %v382
    %v384 = vmul.f32 %v344, 2.0
    %v385 = vsub.f32 %v383, %v384
    %v386 = vmax.f32 %v385, 0.0
    %v387 = vsel %vm106, %v386, -inf
    %v388 = vsel %vm227, %v387, -inf
    %389 = vmax.xlane.f32.xlu0 %v388
    %v390 = vpop.xlane.xlu0 %389
    %v391 = vsel %vm106, inf, %v386
    %v392 = vsel %vm227, %v391, inf
    %393 = vmin.xlane.f32.xlu0 %v392
    %v394 = vpop.xlane.xlu0 %393
    %v395 = vmax.f32 %v390, 1e-12
    %v396 = vrsqrt.pop %v395
    %v397 = vmul.f32 %v395, %v396
    %vm398 = vcmp.eq.f32.partialorder %v395, inf
    %v399 = vsel %vm398, %v395, %v397
    %vm400 = vcmp.eq.f32.partialorder %v395, 0.0
    %v401 = vand.u32 %v395, 2147483648
    %v402 = vsel %vm400, %v401, %v399
    %v403 = vmax.f32 %v394, 1e-12
    %v404 = vrsqrt.pop %v403
    %v405 = vmul.f32 %v403, %v404
    %vm406 = vcmp.eq.f32.partialorder %v403, inf
    %v407 = vsel %vm406, %v403, %v405
    %vm408 = vcmp.eq.f32.partialorder %v403, 0.0
    %v409 = vand.u32 %v403, 2147483648
    %v410 = vsel %vm408, %v409, %v407
    %v411 = vsub.f32 %v402, %v410
    %v412 = vadd.f32 %v411, 1.2
    %v413 = vmax.f32 %v412, 0.0
    %v414 = vsel %vm254, %v413, 0.0
    %415 = vadd.xlane.f32.xlu0 %v414
    %v416 = vpop.xlane.xlu0 %415
    %v417 = vrot.slane %v416, 4
    %v418 = vadd.f32 %v416, %v417
    %v419 = vrot.slane %v418, 2
    %v420 = vadd.f32 %v418, %v419
    %v421 = vrot.slane %v420, 1
    %v422 = vadd.f32 %v420, %v421
    %s423 = vtos %v422
    %v424 = vstv %s423
    %v425 = vmul.f32 %v424, %v266
    %v426 = vadd.f32 %v268, %v425
    %v427 = vld [vmem:[#allocation2] sm:$0xff]
    %v428 = vmul.f32 %v427, %v427
    %v429 = vsel %vm109, %v428, 0.0
    %430 = vadd.xlane.f32.xlu0 %v429
    %v431 = vpop.xlane.xlu0 %430
    %v433 = vsel %vm109, %v427, 0
    %435 = vmatprep.subr.mxu0 0.0
    %436 = vmatpush1.xpose.msra.mxu0 %v433
    %437 = vmatprep.subr.mxu0 0.0
    %438 = vmatpush1.xpose.msra.mxu0 0.0
    %439 = vmatprep.subr.mxu0 0.0
    %440 = vmatpush1.xpose.msra.mxu0 0.0
    %441 = vmatprep.subr.mxu0 0.0
    %442 = vmatpush1.xpose.msra.mxu0 0.0
    %443 = vmatprep.subr.mxu0 0.0
    %444 = vmatpush1.xpose.msra.mxu0 0.0
    %445 = vmatprep.subr.mxu0 0.0
    %446 = vmatpush1.xpose.msra.mxu0 0.0
    %447 = vmatprep.subr.mxu0 0.0
    %448 = vmatpush1.xpose.msra.mxu0 0.0
    %449 = vmatprep.subr.mxu0 0.0
    %450 = vmatpush1.xpose.msra.mxu0 0.0
    %451 = vmatprep.subr.mxu0 0.0
    %452 = vmatpush1.xpose.msra.mxu0 0.0
    %453 = vmatprep.subr.mxu0 0.0
    %454 = vmatpush1.xpose.msra.mxu0 0.0
    %455 = vmatprep.subr.mxu0 0.0
    %456 = vmatpush1.xpose.msra.mxu0 0.0
    %457 = vmatprep.subr.mxu0 0.0
    %458 = vmatpush1.xpose.msra.mxu0 0.0
    %459 = vmatprep.subr.mxu0 0.0
    %460 = vmatpush1.xpose.msra.mxu0 0.0
    %461 = vmatprep.subr.mxu0 0.0
    %462 = vmatpush1.xpose.msra.mxu0 0.0
    %463 = vmatprep.subr.mxu0 0.0
    %464 = vmatpush1.xpose.msra.mxu0 0.0
    %465 = vmatprep.subr.mxu0 0.0
    %466 = vmatpush1.xpose.msra.mxu0 0.0
    %467 = vmatprep.subr.mxu0 0.0
    %468 = vmatpush1.xpose.msra.mxu0 0.0
    %469 = vmatprep.subr.mxu0 0.0
    %470 = vmatpush1.xpose.msra.mxu0 0.0
    %471 = vmatprep.subr.mxu0 0.0
    %472 = vmatpush1.xpose.msra.mxu0 0.0
    %473 = vmatprep.subr.mxu0 0.0
    %474 = vmatpush1.xpose.msra.mxu0 0.0
    %475 = vmatprep.subr.mxu0 0.0
    %476 = vmatpush1.xpose.msra.mxu0 0.0
    %477 = vmatprep.subr.mxu0 0.0
    %478 = vmatpush1.xpose.msra.mxu0 0.0
    %479 = vmatprep.subr.mxu0 0.0
    %480 = vmatpush1.xpose.msra.mxu0 0.0
    %481 = vmatprep.subr.mxu0 0.0
    %482 = vmatpush1.xpose.msra.mxu0 0.0
    %483 = vmatprep.subr.mxu0 0.0
    %484 = vmatpush1.xpose.msra.mxu0 0.0
    %485 = vmatprep.subr.mxu0 0.0
    %486 = vmatpush1.xpose.msra.mxu0 0.0
    %487 = vmatprep.subr.mxu0 0.0
    %488 = vmatpush1.xpose.msra.mxu0 0.0
    %489 = vmatprep.subr.mxu0 0.0
    %490 = vmatpush1.xpose.msra.mxu0 0.0
    %491 = vmatprep.subr.mxu0 0.0
    %492 = vmatpush1.xpose.msra.mxu0 0.0
    %493 = vmatprep.subr.mxu0 0.0
    %494 = vmatpush1.xpose.msra.mxu0 0.0
    %495 = vmatprep.subr.mxu0 0.0
    %496 = vmatpush1.xpose.msra.mxu0 0.0
    %497 = vmatprep.subr.mxu0 0.0
    %498 = vmatpush1.xpose.msra.mxu0 0.0
    %499 = vmatprep.mubr.f32.mxu0 0.0
    %500 = vmatmul.mubr.f32.gmra.mrb[0].mxu0 %v433
    %v501 = vpop.f32.mrb[0].mxu0
    %v502 = vadd.f32 0.0, %v501
    %v503 = vpop.f32.mrb[0].mxu0
    %504 = vdwg.mxu0
    %505 = vxpose.xlu0.b32.start [1/16] %v431, 128
    %506 = vxpose.xlu0.b32.cont [2/16] 0.0, 128
    %507 = vxpose.xlu0.b32.cont [3/16] 0.0, 128
    %508 = vxpose.xlu0.b32.cont [4/16] 0.0, 128
    %509 = vxpose.xlu0.b32.cont [5/16] 0.0, 128
    %510 = vxpose.xlu0.b32.cont [6/16] 0.0, 128
    %511 = vxpose.xlu0.b32.cont [7/16] 0.0, 128
    %512 = vxpose.xlu0.b32.cont [8/16] 0.0, 128
    %513 = vxpose.xlu0.b32.cont [9/16] 0.0, 128
    %514 = vxpose.xlu0.b32.cont [10/16] 0.0, 128
    %515 = vxpose.xlu0.b32.cont [11/16] 0.0, 128
    %516 = vxpose.xlu0.b32.cont [12/16] 0.0, 128
    %517 = vxpose.xlu0.b32.cont [13/16] 0.0, 128
    %518 = vxpose.xlu0.b32.cont [14/16] 0.0, 128
    %519 = vxpose.xlu0.b32.cont [15/16] 0.0, 128
    %520 = vxpose.xlu0.b32.end [16/16] 0.0, 128
    %v521 = vpop.trf.xlu0
    %v522 = vpop.trf.xlu0
    %v523 = vpop.trf.xlu0
    %v524 = vpop.trf.xlu0
    %v525 = vpop.trf.xlu0
    %v526 = vpop.trf.xlu0
    %v527 = vpop.trf.xlu0
    %v528 = vpop.trf.xlu0
    %v529 = vpop.trf.xlu0
    %v530 = vpop.trf.xlu0
    %v531 = vpop.trf.xlu0
    %v532 = vpop.trf.xlu0
    %v533 = vpop.trf.xlu0
    %v534 = vpop.trf.xlu0
    %v535 = vpop.trf.xlu0
    %v536 = vpop.trf.xlu0
    %v537 = vlaneseq
    %v538 = vshrl.u32 %v537, 7
    %v539 = vsub.s32 0, %v538
    %v540 = vrot.slane %v521, %v539
    %v541 = vadd.f32 %v431, %v540
    %v542 = vmul.f32 %v502, 2.0
    %v543 = vsub.f32 %v541, %v542
    %v544 = vmax.f32 %v543, 0.0
    %v545 = vsel %vm106, %v544, -inf
    %v546 = vsel %vm227, %v545, -inf
    %547 = vmax.xlane.f32.xlu0 %v546
    %v548 = vpop.xlane.xlu0 %547
    %v549 = vsel %vm106, inf, %v544
    %v550 = vsel %vm227, %v549, inf
    %551 = vmin.xlane.f32.xlu0 %v550
    %v552 = vpop.xlane.xlu0 %551
    %v553 = vmax.f32 %v548, 1e-12
    %v554 = vrsqrt.pop %v553
    %v555 = vmul.f32 %v553, %v554
    %vm556 = vcmp.eq.f32.partialorder %v553, inf
    %v557 = vsel %vm556, %v553, %v555
    %vm558 = vcmp.eq.f32.partialorder %v553, 0.0
    %v559 = vand.u32 %v553, 2147483648
    %v560 = vsel %vm558, %v559, %v557
    %v561 = vmax.f32 %v552, 1e-12
    %v562 = vrsqrt.pop %v561
    %v563 = vmul.f32 %v561, %v562
    %vm564 = vcmp.eq.f32.partialorder %v561, inf
    %v565 = vsel %vm564, %v561, %v563
    %vm566 = vcmp.eq.f32.partialorder %v561, 0.0
    %v567 = vand.u32 %v561, 2147483648
    %v568 = vsel %vm566, %v567, %v565
    %v569 = vsub.f32 %v560, %v568
    %v570 = vadd.f32 %v569, 1.2
    %v571 = vmax.f32 %v570, 0.0
    %v572 = vsel %vm254, %v571, 0.0
    %573 = vadd.xlane.f32.xlu0 %v572
    %v574 = vpop.xlane.xlu0 %573
    %v575 = vrot.slane %v574, 4
    %v576 = vadd.f32 %v574, %v575
    %v577 = vrot.slane %v576, 2
    %v578 = vadd.f32 %v576, %v577
    %v579 = vrot.slane %v578, 1
    %v580 = vadd.f32 %v578, %v579
    %s581 = vtos %v580
    %v582 = vstv %s581
    %v583 = vmul.f32 %v582, %v266
    %v584 = vadd.f32 %v426, %v583
    %v585 = vld [vmem:[%s4] sm:$0xff]
    %vm586 = vcmask 130048
    %v587 = vsel %vm586, %v585, -inf
    %588 = vmax.xlane.f32.xlu0 %v587
    %v589 = vpop.xlane.xlu0 %588
    %v590 = vsub.f32 %v585, %v589
    %v591 = vmul.f32 %v590, 1.442695
    %v592 = vpow.pop %v591
    %v593 = vsel %vm586, %v592, 0.0
    %594 = vadd.xlane.f32.xlu0 %v593
    %v595 = vpop.xlane.xlu0 %594
    %v596 = vlog2.pop %v595
    %v597 = vmul.f32 %v596, 0.6931472
    %v598 = vadd.f32 %v589, %v597
    %v599 = vlaneseq
    %v600 = vand.u32 %v599, 127
    %vm601 = vcmp.eq.s32.totalorder %v600, %v101
    %v602 = vsel %vm601, %v585, 0.0
    %v603 = vsel %vm586, %v602, 0.0
    %604 = vadd.xlane.f32.xlu0 %v603
    %v605 = vpop.xlane.xlu0 %604
    %v606 = vsub.f32 %v598, %v605
    %v607 = vsel %vm254, %v606, 0.0
    %608 = vadd.xlane.f32.xlu0 %v607
    %v609 = vpop.xlane.xlu0 %608
    %v610 = vrot.slane %v609, 4
    %v611 = vadd.f32 %v609, %v610
    %v612 = vrot.slane %v611, 2
    %v613 = vadd.f32 %v611, %v612
    %v614 = vrot.slane %v613, 1
    %v615 = vadd.f32 %v613, %v614
    %s616 = vtos %v615
    %v617 = vstv %s616
    %v618 = vmul.f32 %v617, %v266
    %v619 = vadd.f32 %v618, 0.0
    %v620 = vld [vmem:[#allocation5] sm:$0xff]
    %v621 = vsel %vm586, %v620, -inf
    %622 = vmax.xlane.f32.xlu0 %v621
    %v623 = vpop.xlane.xlu0 %622
    %v624 = vsub.f32 %v620, %v623
    %v625 = vmul.f32 %v624, 1.442695
    %v626 = vpow.pop %v625
    %v627 = vsel %vm586, %v626, 0.0
    %628 = vadd.xlane.f32.xlu0 %v627
    %v629 = vpop.xlane.xlu0 %628
    %v630 = vlog2.pop %v629
    %v631 = vmul.f32 %v630, 0.6931472
    %v632 = vadd.f32 %v623, %v631
    %v633 = vsel %vm601, %v620, 0.0
    %v634 = vsel %vm586, %v633, 0.0
    %635 = vadd.xlane.f32.xlu0 %v634
    %v636 = vpop.xlane.xlu0 %635
    %v637 = vsub.f32 %v632, %v636
    %v638 = vsel %vm254, %v637, 0.0
    %639 = vadd.xlane.f32.xlu0 %v638
    %v640 = vpop.xlane.xlu0 %639
    %v641 = vrot.slane %v640, 4
    %v642 = vadd.f32 %v640, %v641
    %v643 = vrot.slane %v642, 2
    %v644 = vadd.f32 %v642, %v643
    %v645 = vrot.slane %v644, 1
    %v646 = vadd.f32 %v644, %v645
    %s647 = vtos %v646
    %v648 = vstv %s647
    %v649 = vmul.f32 %v648, %v266
    %v650 = vadd.f32 %v619, %v649
    %v651 = vld [vmem:[#allocation7] sm:$0xff]
    %v652 = vsel %vm586, %v651, -inf
    %653 = vmax.xlane.f32.xlu0 %v652
    %v654 = vpop.xlane.xlu0 %653
    %v655 = vsub.f32 %v651, %v654
    %v656 = vmul.f32 %v655, 1.442695
    %v657 = vpow.pop %v656
    %v658 = vsel %vm586, %v657, 0.0
    %659 = vadd.xlane.f32.xlu0 %v658
    %v660 = vpop.xlane.xlu0 %659
    %v661 = vlog2.pop %v660
    %v662 = vmul.f32 %v661, 0.6931472
    %v663 = vadd.f32 %v654, %v662
    %v664 = vsel %vm601, %v651, 0.0
    %v665 = vsel %vm586, %v664, 0.0
    %666 = vadd.xlane.f32.xlu0 %v665
    %v667 = vpop.xlane.xlu0 %666
    %v668 = vsub.f32 %v663, %v667
    %v669 = vsel %vm254, %v668, 0.0
    %670 = vadd.xlane.f32.xlu0 %v669
    %v671 = vpop.xlane.xlu0 %670
    %v672 = vrot.slane %v671, 4
    %v673 = vadd.f32 %v671, %v672
    %v674 = vrot.slane %v673, 2
    %v675 = vadd.f32 %v673, %v674
    %v676 = vrot.slane %v675, 1
    %v677 = vadd.f32 %v675, %v676
    %s678 = vtos %v677
    %v679 = vstv %s678
    %v680 = vmul.f32 %v679, %v266
    %v681 = vadd.f32 %v650, %v680
    %v682 = vrcp.pop 3.0
    %v683 = vmul.f32 %v584, %v682
    %v684 = vmul.f32 %v681, %v682
    %v685 = vmul.f32 %v684, 2.0
    %v686 = vadd.f32 %v683, %v685
    %vm687 = vcmask 0
    %688 = vst.msk [vmem:[#allocation8] sm:$0x1] %vm687, %v686
    %689 = vst.msk [vmem:[#allocation9] sm:$0x1] %vm687, %v683
    %690 = vst.msk [vmem:[#allocation11] sm:$0x1] %vm687, %v684
    // Predicated region
    $region42: #{tpu_custom_call.1} parent=1 // pred_check
      _
    $region43: #{tpu_custom_call.1} parent=1 // pred_check_branch
      %692 = sbr.rel (0) target = $region45
    $region44: #{tpu_custom_call.1} parent=1 // pred_region
      %s694 = ssub.s32 16, 16
      %695 = vsyncadd [#allocation4], %s694
      %s697 = sshll.u32 [#allocation8], 4
      %s698 = int_to_ptr.vmem [resolvable:$true] %s697
      %700 = dma.vmem_to_hbm [thread:$0]  %s698, 16, %s7, [#allocation4]
    $region45: #{tpu_custom_call.1} parent=1 // pred_fallthru
      _
    // Predicated region
    $region46: #{tpu_custom_call.1} parent=1 // pred_check
      _
    $region47: #{tpu_custom_call.1} parent=1 // pred_check_branch
      %702 = sbr.rel (0) target = $region49
    $region48: #{tpu_custom_call.1} parent=1 // pred_region
      %s704 = ssub.s32 16, 16
      %705 = vsyncadd [#allocation10], %s704
      %s707 = sshll.u32 [#allocation9], 4
      %s708 = int_to_ptr.vmem [resolvable:$true] %s707
      %710 = dma.vmem_to_hbm [thread:$0]  %s708, 16, %s8, [#allocation10]
    $region49: #{tpu_custom_call.1} parent=1 // pred_fallthru
      _
    // Predicated region
    $region50: #{tpu_custom_call.1} parent=1 // pred_check
      _
    $region51: #{tpu_custom_call.1} parent=1 // pred_check_branch
      %712 = sbr.rel (0) target = $region53
    $region52: #{tpu_custom_call.1} parent=1 // pred_region
      %s714 = ssub.s32 16, 16
      %715 = vsyncadd [#allocation10], %s714
      %s717 = sshll.u32 [#allocation11], 4
      %s718 = int_to_ptr.vmem [resolvable:$true] %s717
      %720 = dma.vmem_to_hbm [thread:$0]  %s718, 16, %s9, [#allocation10]
    $region53: #{tpu_custom_call.1} parent=1 // pred_fallthru
      _
    // Predicated region
    $region54: #{tpu_custom_call.1} parent=1 // pred_check
      _
    $region55: #{tpu_custom_call.1} parent=1 // pred_check_branch
      %722 = sbr.rel (0) target = $region57
    $region56: #{tpu_custom_call.1} parent=1 // pred_region
      %723 = dma.done [#allocation4], 16
    $region57: #{tpu_custom_call.1} parent=1 // pred_fallthru
      _
    // Predicated region
    $region58: #{tpu_custom_call.1} parent=1 // pred_check
      _
    $region59: #{tpu_custom_call.1} parent=1 // pred_check_branch
      %725 = sbr.rel (0) target = $region61
    $region60: #{tpu_custom_call.1} parent=1 // pred_region
      %726 = dma.done [#allocation10], 16
    $region61: #{tpu_custom_call.1} parent=1 // pred_fallthru
      _
    // Predicated region
    $region62: #{tpu_custom_call.1} parent=1 // pred_check
      _
    $region63: #{tpu_custom_call.1} parent=1 // pred_check_branch
      %728 = sbr.rel (0) target = $region65
    $region64: #{tpu_custom_call.1} parent=1 // pred_region
      %729 = dma.done [#allocation10], 16
    $region65: #{tpu_custom_call.1} parent=1 // pred_fallthru
      _
    %730 = vsyncpa [#allocation3], 1
    %731 = vsyncpa [#allocation6], 1
    %732 = vsyncpa [#allocation4], 1
    %733 = vsyncpa [#allocation10], 1

</llo_original>
